<compile_context>
chip_gen: v7x
topology: tpu7x:2x2x1
jax: 0.10.0
libtpu: 0.0.40
codegen_flags: <defaults>
</compile_context>

<pallas_src>
import functools

import jax
import jax.numpy as jnp
from jax.experimental import pallas as pl
from jax.experimental.pallas import tpu as pltpu


def _tpu_generation_params():
    """(target_input_tile_bytes, pipeline_vmem_budget_bytes, num_tensorcores)."""
    kind = ""
    try:
        kind = jax.devices()[0].device_kind.lower()
    except Exception:  # defensive: fall back to safe defaults
        pass
    if "v7" in kind or "7x" in kind:
        # 64 MiB VMEM per TC / 32 MiB scoped default, ~3.2 TB/s HBM: big tiles.
        return 4 << 20, 24 << 20, 2
    if "v6" in kind:
        return 3 << 20, 24 << 20, 1
    if "v5" in kind:
        # 16 MiB scoped-VMEM default on v5e: total pipeline footprint <= 12 MiB.
        return int(1.5 * (1 << 20)), 12 << 20, 1
    return 2 << 20, 12 << 20, 1


def _durloss_kernel(dur_ref, pred_ref, out_ref, acc_ref, *, min_len, inv_n,
                    blocks_per_core, n_lane_blocks, n_full_blocks, all_full):
    # dur_ref / pred_ref : (B, TL) input tiles in VMEM
    # out_ref            : (8, 128) per-core result slab (written on last step)
    # acc_ref            : (B, TL) f32 VMEM scratch holding per-lane partial sums
    p = pl.program_id(0)   # parallel axis (megacore split on multi-TC chips)
    i = pl.program_id(1)   # reduction axis over lane blocks

    @pl.when(i == 0)
    def _zero():
        acc_ref[...] = jnp.zeros_like(acc_ref)

    blk = p * blocks_per_core + i                    # logical lane-block index
    d = dur_ref[...].astype(jnp.float32)
    e = jnp.exp(pred_ref[...].astype(jnp.float32))   # EUP transcendental
    diff = d - e

    if all_full:
        # Every visited block lies entirely inside [0, min_len): no masking.
        acc_ref[...] += diff * diff
    else:
        if n_full_blocks > 0:
            @pl.when(blk < n_full_blocks)
            def _interior():                         # unmasked fast path
                acc_ref[...] += diff * diff

        @pl.when(blk >= n_full_blocks)
        def _edge():
            # Partial last block and/or clamped over-hang block: mask the tail.
            b, tl = acc_ref.shape
            lane = jax.lax.broadcasted_iota(jnp.int32, (b, tl), 1)
            gcol = blk * tl + lane                   # global time index
            valid = jnp.logical_and(blk < n_lane_blocks, gcol < min_len)
            # jnp.where is a select: inf/NaN from exp() of padded garbage beyond
            # the array end / min_len never leaks into the accumulator.
            md = jnp.where(valid, diff, jnp.float32(0.0))
            acc_ref[...] += md * md

    @pl.when(i == blocks_per_core - 1)
    def _finalize():
        # Fused cross-lane + cross-sublane reduce (XLU) and 1/n scaling; only a
        # tiny per-core slab goes back to HBM.
        total = jnp.sum(acc_ref[...], axis=1, keepdims=True)     # (B, 1)
        total = jnp.sum(total, axis=0, keepdims=True)            # (1, 1)
        total = total * jnp.float32(inv_n)
        r = jax.lax.broadcasted_iota(jnp.int32, out_ref.shape, 0)
        c = jax.lax.broadcasted_iota(jnp.int32, out_ref.shape, 1)
        out_ref[...] = jnp.where(jnp.logical_and(r == 0, c == 0),
                                 total, jnp.float32(0.0))


def dur_loss(durations: jax.Array, durations_prediction: jax.Array,
             *, _max_block_cols: int | None = None) -> jax.Array:
    """MSE(durations[:, :L], exp(durations_prediction)[:, :L]), L = min(T1, T2).

    HBM-bound op: feeding bf16 inputs halves DMA traffic (the kernel upcasts to
    f32 internally, so v5e stays correct).  `_max_block_cols` is a test-only
    hook that caps the lane-block width to exercise the multi-block grid path.
    """
    assert durations.ndim == 2 and durations_prediction.ndim == 2
    assert durations.shape[0] == durations_prediction.shape[0]
    B = durations.shape[0]
    min_len = min(durations.shape[-1], durations_prediction.shape[-1])
    if min_len == 0 or B == 0:
        # torch.nn.MSELoss(reduction='mean') over zero elements -> NaN.
        return jnp.float32(jnp.nan)
    n = B * min_len

    target_tile_bytes, vmem_budget, num_tc = _tpu_generation_params()
    itemsize = max(durations.dtype.itemsize, durations_prediction.dtype.itemsize)
    min_len_padded = 128 * pl.cdiv(min_len, 128)

    # Lane-block width: aim for MiB-scale input tiles (amortizes ~0.35 us
    # per-step overhead and lengthens DMA bursts), capped by the VMEM budget
    # (2 inputs x 2 pipeline buffers + f32 accumulator) and the problem size.
    bytes_per_col = B * (2 * 2 * itemsize + 4)
    tl_target = (target_tile_bytes // max(1, B * itemsize)) // 128 * 128
    tl_budget = (vmem_budget // max(1, bytes_per_col)) // 128 * 128
    TL = max(512, tl_target)
    TL = min(TL, max(128, tl_budget))
    TL = min(TL, min_len_padded)
    TL = max(TL, 128)
    if _max_block_cols is not None:
        TL = min(TL, max(128, (_max_block_cols // 128) * 128))

    n_lane_blocks = pl.cdiv(min_len, TL)
    # Megacore split only on multi-TensorCore chips (v7x); pure overhead on
    # single-TC v5e/v6e.
    P = 2 if (num_tc >= 2 and n_lane_blocks >= 2) else 1
    blocks_per_core = pl.cdiv(n_lane_blocks, P)

    n_full_blocks = min_len // TL           # blocks entirely inside [0, min_len)
    all_full = (P * blocks_per_core == n_full_blocks)

    def in_map(p, i):
        # Clamp so an over-hanging (p, i) still DMAs an in-bounds block; the
        # kernel masks its contribution to zero.  min_len <= T1, T2, so this
        # block index is valid for both operands.
        # TODO(synk): on v7x with an odd block count, give core 0 the extra
        # block instead of a masked duplicate DMA.
        return (0, jnp.minimum(p * blocks_per_core + i, n_lane_blocks - 1))

    kernel = functools.partial(
        _durloss_kernel,
        min_len=min_len,
        inv_n=1.0 / n,
        blocks_per_core=blocks_per_core,
        n_lane_blocks=n_lane_blocks,
        n_full_blocks=n_full_blocks,
        all_full=all_full,
    )

    steps = P * blocks_per_core
    cost = pl.CostEstimate(
        flops=3 * steps * B * TL,             # sub, mul, add per visited element
        transcendentals=steps * B * TL,       # one exp per visited element
        bytes_accessed=steps * B * TL * (durations.dtype.itemsize
                                         + durations_prediction.dtype.itemsize)
        + P * 8 * 128 * 4,
    )

    per_core = pl.pallas_call(
        kernel,
        out_shape=jax.ShapeDtypeStruct((P, 8, 128), jnp.float32),
        grid_spec=pltpu.PrefetchScalarGridSpec(
            num_scalar_prefetch=0,
            grid=(P, blocks_per_core),
            in_specs=[
                pl.BlockSpec((B, TL), in_map),
                pl.BlockSpec((B, TL), in_map),
            ],
            # Leading dim squeezed: each parallel slot owns one lane-aligned
            # (8, 128) result slab, written on its final reduction step.
            out_specs=pl.BlockSpec((None, 8, 128), lambda p, i: (p, 0, 0)),
            scratch_shapes=[pltpu.VMEM((B, TL), jnp.float32)],
        ),
        compiler_params=pltpu.CompilerParams(
            dimension_semantics=("parallel", "arbitrary"),
        ),
        cost_estimate=cost,
    )(durations, durations_prediction)

    # Only entry [p, 0, 0] of each slab is non-zero and already scaled by 1/n;
    # the remaining XLA work is a <=2048-element sum.
    return jnp.sum(per_core)


def dur_loss_ref(durations, durations_prediction):
    min_len = min(durations.shape[-1], durations_prediction.shape[-1])
    d = durations[:, :min_len].astype(jnp.float32)
    p = jnp.exp(durations_prediction[:, :min_len].astype(jnp.float32))
    return jnp.mean((d - p) ** 2)


if __name__ == "__main__":
    key = jax.random.PRNGKey(0)
    k1, k2, k3, k4 = jax.random.split(key, 4)

    # Small shapes consistent with the module: batch=2, mismatched trailing
    # lengths to exercise the min_len truncation (single-block edge path).
    B = 2
    durations = jax.random.uniform(k1, (B, 20), dtype=jnp.float32) * 5.0
    durations_prediction = jax.random.normal(k2, (B, 16), dtype=jnp.float32) * 0.5

    loss = dur_loss(durations, durations_prediction)
    jax.block_until_ready(loss)
    ref = dur_loss_ref(durations, durations_prediction)
    assert jnp.allclose(loss, ref, rtol=1e-4, atol=1e-6), (loss, ref)

    # Larger check: default (big-tile, single-step) path with a masked tail.
    B2 = 8
    dur2 = jax.random.uniform(k3, (B2, 1600), dtype=jnp.float32) * 5.0
    pred2 = jax.random.normal(k4, (B2, 1480), dtype=jnp.float32) * 0.5
    loss2 = dur_loss(dur2, pred2)
    jax.block_until_ready(loss2)
    ref2 = dur_loss_ref(dur2, pred2)
    assert jnp.allclose(loss2, ref2, rtol=1e-4, atol=1e-6), (loss2, ref2)

    # Same data through the multi-block grid path (test-only tile cap) to
    # exercise the accumulator, interior fast path and edge masking.
    loss3 = dur_loss(dur2, pred2, _max_block_cols=256)
    jax.block_until_ready(loss3)
    assert jnp.allclose(loss3, ref2, rtol=1e-4, atol=1e-6), (loss3, ref2)

    print("KERNEL_OK")
</pallas_src>

<mosaic_0001>
module attributes {stable_mosaic.version = 11 : i64} {
  func.func @_durloss_kernel(%arg0: i32, %arg1: i32, %arg2: memref<2x128xf32, #tpu.memory_space<vmem>>, %arg3: memref<2x128xf32, #tpu.memory_space<vmem>>, %arg4: memref<1x8x128xf32, #tpu.memory_space<vmem>>, %arg5: memref<2x128xf32, #tpu.memory_space<vmem>>) attributes {dimension_semantics = [#tpu.dimension_semantics<parallel>, #tpu.dimension_semantics<arbitrary>], iteration_bounds = array<i64: 1, 1>, scalar_prefetch = 0 : i64, scratch_operands = 1 : i64, tpu.core_type = #tpu.core_type<tc>, window_params = [{transform_indices = @transform_0, window_bounds = array<i64: 2, 128>}, {transform_indices = @transform_1, window_bounds = array<i64: 2, 128>}, {transform_indices = @transform_2, window_bounds = array<i64: 1, 8, 128>}]} {
    %c0_i32 = arith.constant 0 : i32
    %0 = arith.cmpi eq, %arg1, %c0_i32 : i32
    %1 = arith.extui %0 : i1 to i32
    %c0_i32_0 = arith.constant 0 : i32
    %2 = arith.cmpi ne, %1, %c0_i32_0 : i32
    scf.if %2 {
      %cst = arith.constant 0.000000e+00 : f32
      %15 = vector.broadcast %cst : f32 to vector<2x128xf32>
      %c0_8 = arith.constant 0 : index
      %c0_9 = arith.constant 0 : index
      %16 = vector.load %arg5[%c0_8, %c0_9] : memref<2x128xf32, #tpu.memory_space<vmem>>, vector<2x128xf32>
      tpu.vector_store %arg5[%c0_8, %c0_9], %15 {strides = array<i32>} : memref<2x128xf32, #tpu.memory_space<vmem>>, vector<2x128xf32>,
    } else {
    }
    %c1_i32 = arith.constant 1 : i32
    %3 = arith.muli %arg0, %c1_i32 : i32
    %4 = arith.addi %3, %arg1 : i32
    %c0 = arith.constant 0 : index
    %c0_1 = arith.constant 0 : index
    %5 = vector.load %arg2[%c0, %c0_1] : memref<2x128xf32, #tpu.memory_space<vmem>>, vector<2x128xf32>
    %c0_2 = arith.constant 0 : index
    %c0_3 = arith.constant 0 : index
    %6 = vector.load %arg3[%c0_2, %c0_3] : memref<2x128xf32, #tpu.memory_space<vmem>>, vector<2x128xf32>
    %7 = math.exp %6 : vector<2x128xf32>
    %8 = arith.subf %5, %7 : vector<2x128xf32>
    %c0_i32_4 = arith.constant 0 : i32
    %9 = arith.cmpi sge, %4, %c0_i32_4 : i32
    %10 = arith.extui %9 : i1 to i32
    %c0_i32_5 = arith.constant 0 : i32
    %11 = arith.cmpi ne, %10, %c0_i32_5 : i32
    scf.if %11 {
      %15 = tpu.iota {dimensions = array<i32: 1>} : vector<2x128xi32>
      %c128_i32 = arith.constant 128 : i32
      %16 = arith.muli %4, %c128_i32 : i32
      %17 = vector.broadcast %16 : i32 to vector<2x128xi32>
      %18 = arith.addi %17, %15 : vector<2x128xi32>
      %c1_i32_8 = arith.constant 1 : i32
      %19 = arith.cmpi slt, %4, %c1_i32_8 : i32
      %c16_i32 = arith.constant 16 : i32
      %20 = vector.broadcast %c16_i32 : i32 to vector<2x128xi32>
      %21 = arith.cmpi slt, %18, %20 : vector<2x128xi32>
      %22 = vector.broadcast %19 : i1 to vector<2x128xi1>
      %23 = arith.andi %22, %21 : vector<2x128xi1>
      %cst = arith.constant 0.000000e+00 : f32
      %24 = vector.broadcast %cst : f32 to vector<2x128xf32>
      %25 = arith.select %23, %8, %24 : vector<2x128xi1>, vector<2x128xf32>
      %c0_9 = arith.constant 0 : index
      %c0_10 = arith.constant 0 : index
      %26 = vector.load %arg5[%c0_9, %c0_10] : memref<2x128xf32, #tpu.memory_space<vmem>>, vector<2x128xf32>
      %27 = arith.mulf %25, %25 : vector<2x128xf32>
      %28 = arith.addf %26, %27 : vector<2x128xf32>
      %c0_11 = arith.constant 0 : index
      %c0_12 = arith.constant 0 : index
      %29 = vector.load %arg5[%c0_11, %c0_12] : memref<2x128xf32, #tpu.memory_space<vmem>>, vector<2x128xf32>
      tpu.vector_store %arg5[%c0_11, %c0_12], %28 {strides = array<i32>} : memref<2x128xf32, #tpu.memory_space<vmem>>, vector<2x128xf32>,
    } else {
    }
    %c0_i32_6 = arith.constant 0 : i32
    %12 = arith.cmpi eq, %arg1, %c0_i32_6 : i32
    %13 = arith.extui %12 : i1 to i32
    %c0_i32_7 = arith.constant 0 : i32
    %14 = arith.cmpi ne, %13, %c0_i32_7 : i32
    scf.if %14 {
      %c0_8 = arith.constant 0 : index
      %c0_9 = arith.constant 0 : index
      %15 = vector.load %arg5[%c0_8, %c0_9] : memref<2x128xf32, #tpu.memory_space<vmem>>, vector<2x128xf32>
      %cst = arith.constant dense<0.000000e+00> : vector<2xf32>
      %16 = vector.multi_reduction <add>, %15, %cst [1] : vector<2x128xf32> to vector<2xf32>
      %17 = vector.shape_cast %16 : vector<2xf32> to vector<2x1xf32>
      %cst_10 = arith.constant dense<0.000000e+00> : vector<1xf32>
      %18 = vector.multi_reduction <add>, %17, %cst_10 [0] : vector<2x1xf32> to vector<1xf32>
      %19 = vector.shape_cast %18 : vector<1xf32> to vector<1x1xf32>
      %cst_11 = arith.constant 3.125000e-02 : f32
      %20 = vector.broadcast %cst_11 : f32 to vector<1x1xf32>
      %21 = arith.mulf %19, %20 : vector<1x1xf32>
      %22 = tpu.iota {dimensions = array<i32: 0>} : vector<8x128xi32>
      %23 = tpu.iota {dimensions = array<i32: 1>} : vector<8x128xi32>
      %c0_i32_12 = arith.constant 0 : i32
      %24 = vector.broadcast %c0_i32_12 : i32 to vector<8x128xi32>
      %25 = arith.cmpi eq, %22, %24 : vector<8x128xi32>
      %c0_i32_13 = arith.constant 0 : i32
      %26 = vector.broadcast %c0_i32_13 : i32 to vector<8x128xi32>
      %27 = arith.cmpi eq, %23, %26 : vector<8x128xi32>
      %28 = arith.andi %25, %27 : vector<8x128xi1>
      %cst_14 = arith.constant 0.000000e+00 : f32
      %29 = vector.shape_cast %21 : vector<1x1xf32> to vector<1x1xf32>
      %30 = vector.broadcast %29 : vector<1x1xf32> to vector<8x128xf32>
      %31 = vector.broadcast %cst_14 : f32 to vector<8x128xf32>
      %32 = arith.select %28, %30, %31 : vector<8x128xi1>, vector<8x128xf32>
      %c0_15 = arith.constant 0 : index
      %c0_16 = arith.constant 0 : index
      %c0_17 = arith.constant 0 : index
      %33 = vector.load %arg4[%c0_15, %c0_16, %c0_17] : memref<1x8x128xf32, #tpu.memory_space<vmem>>, vector<1x8x128xf32>
      %34 = vector.shape_cast %33 : vector<1x8x128xf32> to vector<8x128xf32>
      %35 = vector.shape_cast %32 : vector<8x128xf32> to vector<1x8x128xf32>
      tpu.vector_store %arg4[%c0_15, %c0_16, %c0_17], %35 {strides = array<i32>} : memref<1x8x128xf32, #tpu.memory_space<vmem>>, vector<1x8x128xf32>,
    } else {
    }
    return
  }
  func.func @transform_0(%arg0: i32, %arg1: i32) -> (i32, i32) {
    %c1_i32 = arith.constant 1 : i32
    %0 = arith.muli %arg0, %c1_i32 : i32
    %1 = arith.addi %0, %arg1 : i32
    %c0_i32 = arith.constant 0 : i32
    %2 = arith.minsi %1, %c0_i32 : i32
    %c0_i32_0 = arith.constant 0 : i32
    %c0_i32_1 = arith.constant 0 : i32
    return %c0_i32_0, %2 : i32, i32
  }
  func.func @transform_1(%arg0: i32, %arg1: i32) -> (i32, i32) {
    %c1_i32 = arith.constant 1 : i32
    %0 = arith.muli %arg0, %c1_i32 : i32
    %1 = arith.addi %0, %arg1 : i32
    %c0_i32 = arith.constant 0 : i32
    %2 = arith.minsi %1, %c0_i32 : i32
    %c0_i32_0 = arith.constant 0 : i32
    %c0_i32_1 = arith.constant 0 : i32
    return %c0_i32_0, %2 : i32, i32
  }
  func.func @transform_2(%arg0: i32, %arg1: i32) -> (i32, i32, i32) {
    %c0_i32 = arith.constant 0 : i32
    %c0_i32_0 = arith.constant 0 : i32
    %c0_i32_1 = arith.constant 0 : i32
    return %arg0, %c0_i32, %c0_i32_0 : i32, i32, i32
  }
}

</mosaic_0001>

<llo_original>
// kernel: tpu_custom_call.1
$region0: #{tpu_custom_call.1}
  #allocation0 [shape = 'u32[]', space=smem, size = 0x4, offset = 0x4, fixed_abs, tag = 'smem constant byte address 0x4 - core index']
  #allocation1 [shape = 'u32[144,128]{1,0:T(1,128)}', space=vmem, size = 0x12000, scoped, tag = 'internal scratch']
  #allocation2 [shape = 'f32[2,128]{1,0:T(2,128)}', space=vmem, size = 0x400, scoped, tag = 'scratch operand']
  %s0 = inlined_call_operand.hbm [shape: f32[2,20], index: 0, kind: input, shape index: {}]
  %s1 = inlined_call_operand.vmem [shape: f32[2,16], index: 1, kind: input, shape index: {}]
  %s2 = inlined_call_operand.hbm [shape: f32[1,8,128], index: 2, kind: output, shape index: {}]
  %s3 = sld [smem:[#allocation0]]
  $region34: #{tpu_custom_call.1} parent=0
    _
  %s5 = ssub.s32 1, %s3
  %s6 = scalar_select 0, %s5, %s3
  $region1: #{tpu_custom_call.1} parent=0
    #allocation3 [shape = 'u8[1024]{0}', space=vmem, size = 0x400, scoped, tag = 'input window, operand 0, single buffered']
    #allocation4 [shape = 's32[1]{0}', space=sflag, size = 0x4, scoped, tag = 'scoped memory for tpu_custom_call.1']
    #allocation5 [shape = 's32[1]{0}', space=sflag, size = 0x4, scoped, tag = 'scoped memory for tpu_custom_call.1']
    #allocation6 [shape = 'u8[4096]{0}', space=vmem, size = 0x1000, scoped, tag = 'output window, operand 0, single buffered']
    %7 = vsyncpa [#allocation4], 0
    %8 = vsyncpa [#allocation5], 0
    // Predicated region
    $region2: #{tpu_custom_call.1} parent=1 // pred_check
      _
    $region3: #{tpu_custom_call.1} parent=1 // pred_check_branch
      %10 = sbr.rel (0) target = $region5
    $region4: #{tpu_custom_call.1} parent=1 // pred_region
      %s11 = sadd.s32 0, 0
      %p12 = scmp.lt.s32.totalorder %s11, 0
      %s13 = scalar_select %p12, %s11, 0
      %s15 = ssub.s32 32, 32
      %16 = vsyncadd [#allocation4], %s15
      %s17 = smul.addr %s13, 32
      %s18 = scalar_lea.hbm %s0, %s17
      %s20 = sshll.u32 [#allocation3], 4
      %s21 = int_to_ptr.vmem [resolvable:$true] %s20
      %23 = dma.hbm_to_vmem [thread:$0]  %s18, 32, %s21, [#allocation4]
    $region5: #{tpu_custom_call.1} parent=1 // pred_fallthru
      _
    // Predicated region
    $region6: #{tpu_custom_call.1} parent=1 // pred_check
      _
    $region7: #{tpu_custom_call.1} parent=1 // pred_check_branch
      %25 = sbr.rel (0) target = $region9
    $region8: #{tpu_custom_call.1} parent=1 // pred_region
      %s26 = sadd.s32 0, 0
      %p27 = scmp.lt.s32.totalorder %s26, 0
      %s28 = scalar_select %p27, %s26, 0
      %p29 = scmp.lt.s32.totalorder %s28, 0
      %s30 = scalar_select %p29, %s28, 0
      %s31 = smul.addr %s30, 2
      %s32 = scalar_lea.vmem %s1, %s31
      %s33 = sadd.s32 0, 0
      %p34 = scmp.lt.s32.totalorder %s33, 0
      %s35 = scalar_select %p34, %s33, 0
    $region9: #{tpu_custom_call.1} parent=1 // pred_fallthru
      _
    // Predicated region
    $region10: #{tpu_custom_call.1} parent=1 // pred_check
      _
    $region11: #{tpu_custom_call.1} parent=1 // pred_check_branch
      %37 = sbr.rel (0) target = $region13
    $region12: #{tpu_custom_call.1} parent=1 // pred_region
      %38 = dma.done [#allocation4], 32
    $region13: #{tpu_custom_call.1} parent=1 // pred_fallthru
      _
    %s39 = sadd.s32 0, 0
    %p40 = scmp.lt.s32.totalorder %s39, 0
    %s41 = scalar_select %p40, %s39, 0
    %p42 = scmp.lt.s32.totalorder %s41, 0
    %s43 = scalar_select %p42, %s41, 0
    %s44 = smul.addr %s43, 2
    %s45 = scalar_lea.vmem %s1, %s44
    %s46 = sadd.s32 0, 0
    %p47 = scmp.lt.s32.totalorder %s46, 0
    %s48 = scalar_select %p47, %s46, 0
    %s49 = sadd.s32 0, 0
    %p50 = scmp.lt.s32.totalorder %s49, 0
    %s51 = scalar_select %p50, %s49, 0
    %p52 = scmp.lt.s32.totalorder %s51, 0
    %s53 = scalar_select %p52, %s51, 0
    %s54 = smul.addr %s53, 2
    %s55 = scalar_lea.vmem %s1, %s54
    %s56 = sadd.s32 0, 0
    %p57 = scmp.lt.s32.totalorder %s56, 0
    %s58 = scalar_select %p57, %s56, 0
    %p59 = scmp.eq.s32.totalorder 0, 0
    // Predicated region
    $region14: #{tpu_custom_call.1} parent=1 // pred_check
      %p60 = pneg %p59
    $region15: #{tpu_custom_call.1} parent=1 // pred_check_branch
      %62 = sbr.rel (%p60) target = $region17
    $region16: #{tpu_custom_call.1} parent=1 // pred_region
      %63 = vst [vmem:[#allocation2] sm:$0x3] 0.0
    $region17: #{tpu_custom_call.1} parent=1 // pred_fallthru
      _
    %s64 = sadd.s32 0, 0
    %v65 = vld [vmem:[#allocation3] sm:$0x3]
    %v66 = vld [vmem:[%s55] sm:$0x3]
    %v67 = vmul.f32 %v66, 1.442695
    %v68 = vpow.pop %v67
    %v69 = vsub.f32 %v65, %v68
    %p70 = scmp.ge.s32.totalorder %s64, 0
    // Predicated region
    $region18: #{tpu_custom_call.1} parent=1 // pred_check
      %p71 = pneg %p70
    $region19: #{tpu_custom_call.1} parent=1 // pred_check_branch
      %73 = sbr.rel (%p71) target = $region21
    $region20: #{tpu_custom_call.1} parent=1 // pred_region
      %v74 = vlaneseq
      %v75 = vand.u32 %v74, 127
      %s76 = smul.u32 %s64, 128
      %v77 = vstv %s76
      %v78 = vadd.s32 %v77, %v75
      %p79 = scmp.lt.s32.totalorder %s64, 1
      %vm80 = vcmp.lt.s32.totalorder %v78, 16
      %s81 = scalar_select %p79, 1, 0
      %v82 = vstv %s81
      %vm83 = vcmp.eq.s32.totalorder %v82, 1
      %vm84 = vmand %vm83, %vm80
      %v85 = vsel %vm84, %v69, 0.0
      %v86 = vld [vmem:[#allocation2] sm:$0x3]
      %v87 = vmul.f32 %v85, %v85
      %v88 = vadd.f32 %v86, %v87
      %89 = vst [vmem:[#allocation2] sm:$0x3] %v88
    $region21: #{tpu_custom_call.1} parent=1 // pred_fallthru
      _
    // Predicated region
    $region22: #{tpu_custom_call.1} parent=1 // pred_check
      %p90 = pneg %p59
    $region23: #{tpu_custom_call.1} parent=1 // pred_check_branch
      %92 = sbr.rel (%p90) target = $region25
    $region24: #{tpu_custom_call.1} parent=1 // pred_region
      %v93 = vld [vmem:[#allocation2] sm:$0x3]
      %vm94 = vcmask 1041408
      %v95 = vsel %vm94, %v93, 0.0
      %96 = vadd.xlane.f32.xlu0 %v95
      %v97 = vpop.xlane.xlu0 %96
      %v98 = vsel %vm94, %v97, 0.0
      %v99 = vrot.slane %v98, 4
      %v100 = vadd.f32 %v98, %v99
      %v101 = vrot.slane %v100, 2
      %v102 = vadd.f32 %v100, %v101
      %v103 = vrot.slane %v102, 1
      %v104 = vadd.f32 %v102, %v103
      %v105 = vmul.f32 %v104, 0.03125
      %v106 = vlaneseq
      %v107 = vshrl.u32 %v106, 7
      %v108 = vlaneseq
      %v109 = vand.u32 %v108, 127
      %vm110 = vcmp.eq.s32.totalorder %v107, 0
      %vm111 = vcmp.eq.s32.totalorder %v109, 0
      %vm112 = vmand %vm110, %vm111
      %v113 = vsel %vm112, %v105, 0.0
      %114 = vst [vmem:[#allocation6] sm:$0xff] %v113
    $region25: #{tpu_custom_call.1} parent=1 // pred_fallthru
      _
    // Predicated region
    $region26: #{tpu_custom_call.1} parent=1 // pred_check
      _
    $region27: #{tpu_custom_call.1} parent=1 // pred_check_branch
      %116 = sbr.rel (0) target = $region29
    $region28: #{tpu_custom_call.1} parent=1 // pred_region
      %s118 = ssub.s32 128, 128
      %119 = vsyncadd [#allocation5], %s118
      %s121 = sshll.u32 [#allocation6], 4
      %s122 = int_to_ptr.vmem [resolvable:$true] %s121
      %124 = dma.vmem_to_hbm [thread:$0]  %s122, 128, %s2, [#allocation5]
    $region29: #{tpu_custom_call.1} parent=1 // pred_fallthru
      _
    // Predicated region
    $region30: #{tpu_custom_call.1} parent=1 // pred_check
      _
    $region31: #{tpu_custom_call.1} parent=1 // pred_check_branch
      %126 = sbr.rel (0) target = $region33
    $region32: #{tpu_custom_call.1} parent=1 // pred_region
      %127 = dma.done [#allocation5], 128
    $region33: #{tpu_custom_call.1} parent=1 // pred_fallthru
      _
    %128 = vsyncpa [#allocation4], 1
    %129 = vsyncpa [#allocation5], 1

</llo_original>
